<compile_context>
chip_gen: v7x
topology: tpu7x:2x2x1
jax: 0.10.0
libtpu: 0.0.40
codegen_flags: <defaults>
</compile_context>

<pallas_src>
import functools

import jax
import jax.numpy as jnp
from jax.experimental import pallas as pl
from jax.experimental.pallas import tpu as pltpu


_ACTS = {
    "tanh": jnp.tanh,
    "sigmoid": jax.nn.sigmoid,
    "relu": lambda x: jnp.maximum(x, 0.0),
    "softplus": jax.nn.softplus,
}


def _round_up(x, m):
    return ((x + m - 1) // m) * m


def _eulernet_kernel(x_ref, w0_ref, wl_ref, bl_ref, wc_ref, bc_ref,
                     cls_ref, trans_ref, *, L, act_name):
    """One row tile of the EulerNet forward pass."""
    h = jnp.float32(0.05)
    act = _ACTS[act_name]

    # Input layer: no bias.
    x = jnp.dot(x_ref[...], w0_ref[...], preferred_element_type=jnp.float32)
    feats = [x]

    # L Euler / residual layers: x <- x + h * act(x @ W_l + b_l)   (unrolled)
    for l in range(L):
        z = jnp.dot(x, wl_ref[l], preferred_element_type=jnp.float32) + bl_ref[l]
        x = x + h * act(z)
        feats.append(x)

    # One full-width, lane-dense store of the packed (tile_n, (L+1)*d_hat)
    # feature slab (avoids L+1 masked stores at unaligned lane offsets).
    trans_ref[...] = jnp.concatenate(feats, axis=1).astype(trans_ref.dtype)

    # Classifier (affine, lane-padded to Kp columns; padded columns are zero
    # and get sliced away in the wrapper).  Hypothesis is applied in the
    # wrapper on the (N, K) slice — no padded pred stream is written.
    cls_ref[...] = (jnp.dot(x, wc_ref[...], preferred_element_type=jnp.float32)
                    + bc_ref[...]).astype(cls_ref.dtype)


def eulernet_forward(x, params, act_function="tanh", tile_n=1024,
                     feature_dtype=jnp.float32):
    """Pallas EulerNet forward.

    Returns (X_predicted (N,K), X_classified (N,K), X_transformed (N,d_hat,L+1)).
    """
    w0, wl, bl, wc, bc = params
    N, d = x.shape
    d_hat = w0.shape[1]
    L = wl.shape[0]
    K = wc.shape[1]
    trans_w = (L + 1) * d_hat

    # --- pad classifier to a lane-dense width Kp (multiple of 128) ----------
    Kp = _round_up(max(K, 1), 128)
    wc_p = jnp.zeros((d_hat, Kp), jnp.float32).at[:, :K].set(wc.astype(jnp.float32))
    bc_p = jnp.zeros((1, Kp), jnp.float32).at[:, :K].set(bc.astype(jnp.float32))

    # --- right-size the row tile ---------------------------------------------
    # Minimize dead padded rows (tile derived from the tile *count*), and give
    # the grid >=2 steps when the batch is big enough so both v7x TensorCores
    # get work under dimension_semantics=("parallel",).
    n_tiles = max(1, -(-N // int(tile_n)))
    if n_tiles == 1 and N >= 512:
        n_tiles = 2
    tile_n_eff = _round_up(-(-N // n_tiles), 8)
    n_pad = tile_n_eff * n_tiles
    grid = (n_tiles,)

    x_p = x.astype(jnp.float32)
    if n_pad != N:
        x_p = jnp.pad(x_p, ((0, n_pad - N), (0, 0)))

    # --- explicit VMEM budget (double-buffered per-tile IO + resident weights)
    feat_bytes = jnp.dtype(feature_dtype).itemsize
    per_step_io = 4 * tile_n_eff * (d + Kp) + feat_bytes * tile_n_eff * trans_w
    weight_bytes = 4 * (w0.size + wl.size + bl.size + wc_p.size + bc_p.size)
    vmem_need = 4 * per_step_io + 2 * weight_bytes + (4 << 20)
    # Cap leaves >=16 MiB headroom on v7x (64 MiB physical); well inside
    # v5e/v6e's 128 MiB.
    vmem_limit = int(min(max(vmem_need, 32 << 20), 48 << 20))

    kernel = functools.partial(_eulernet_kernel, L=L, act_name=act_function)

    row_map = lambda i: (i, 0)
    full2 = lambda i: (0, 0)
    full3 = lambda i: (0, 0, 0)

    in_specs = [
        pl.BlockSpec((tile_n_eff, d), row_map),      # X tile (double-buffered)
        pl.BlockSpec((d, d_hat), full2),             # W0  (VMEM-resident)
        pl.BlockSpec((L, d_hat, d_hat), full3),      # Wl  (VMEM-resident)
        pl.BlockSpec((L, 1, d_hat), full3),          # bl  (VMEM-resident)
        pl.BlockSpec((d_hat, Kp), full2),            # Wc  (VMEM-resident)
        pl.BlockSpec((1, Kp), full2),                # bc  (VMEM-resident)
    ]
    out_specs = (
        pl.BlockSpec((tile_n_eff, Kp), row_map),       # cls (padded to Kp)
        pl.BlockSpec((tile_n_eff, trans_w), row_map),  # packed features
    )
    out_shapes = (
        jax.ShapeDtypeStruct((n_pad, Kp), jnp.float32),
        jax.ShapeDtypeStruct((n_pad, trans_w), feature_dtype),
    )

    flops = 2 * n_pad * (d * d_hat + L * d_hat * d_hat + d_hat * Kp) \
        + 4 * n_pad * L * d_hat
    transcendentals = n_pad * d_hat * L
    bytes_accessed = (4 * (n_pad * d + w0.size + wl.size + bl.size
                           + wc_p.size + bc_p.size + n_pad * Kp)
                      + feat_bytes * n_pad * trans_w)

    cls_p, trans = pl.pallas_call(
        kernel,
        out_shape=out_shapes,
        grid_spec=pltpu.PrefetchScalarGridSpec(
            num_scalar_prefetch=0,
            grid=grid,
            in_specs=in_specs,
            out_specs=out_specs,
        ),
        compiler_params=pltpu.CompilerParams(
            dimension_semantics=("parallel",),
            vmem_limit_bytes=vmem_limit,
        ),
        cost_estimate=pl.CostEstimate(
            flops=int(flops),
            transcendentals=int(transcendentals),
            bytes_accessed=int(bytes_accessed),
        ),
    )(x_p, w0.astype(jnp.float32), wl.astype(jnp.float32),
      bl.astype(jnp.float32), wc_p, bc_p)

    # Strip batch / class padding; apply the hypothesis on the tiny (N, K)
    # logits here (exact, and avoids a padded tile_n x Kp pred write stream).
    cls = cls_p[:N, :K]
    if K == 1:
        pred = jax.nn.sigmoid(cls)
    else:
        pred = jax.nn.softmax(cls, axis=1)

    # Packed (N, (L+1)*d_hat) -> (N, L+1, d_hat) is a free reshape; the final
    # transpose to (N, d_hat, L+1) is kept only to honour the torch output
    # layout.  If the consumer can take (N, L+1, d_hat) directly, drop it to
    # save one full HBM round-trip over the largest array.
    x_transformed = (trans[:N].astype(jnp.float32)
                     .reshape(N, L + 1, d_hat).transpose(0, 2, 1))
    return pred, cls, x_transformed


def _reference_forward(x, params, act_function="tanh"):
    """Pure-JAX reference mirroring the torch module."""
    w0, wl, bl, wc, bc = params
    act = _ACTS[act_function]
    h = 0.05
    feats = []
    x = x @ w0
    feats.append(x)
    for l in range(wl.shape[0]):
        x = x + h * act(x @ wl[l] + bl[l])
        feats.append(x)
    cls = x @ wc + bc
    K = wc.shape[1]
    pred = jax.nn.sigmoid(cls) if K == 1 else jax.nn.softmax(cls, axis=1)
    return pred, cls, jnp.stack(feats, axis=-1)


if __name__ == "__main__":
    # Small, deterministic configuration.
    N, d, d_hat, K, L = 8, 4, 32, 3, 4
    act_function = "tanh"

    key = jax.random.PRNGKey(0)
    kx, k0, kw, kb, kc, kbc = jax.random.split(key, 6)

    x = jax.random.normal(kx, (N, d), dtype=jnp.float32)
    # Parameters (deterministic, synthetic). Stored already transposed (in, out).
    w0 = jax.random.normal(k0, (d, d_hat), dtype=jnp.float32) * 0.1
    wl = jax.random.normal(kw, (L, d_hat, d_hat), dtype=jnp.float32) * 0.1
    bl = jax.random.normal(kb, (L, 1, d_hat), dtype=jnp.float32) * 0.1
    wc = jax.random.normal(kc, (d_hat, K), dtype=jnp.float32) * 0.1
    bc = jax.random.normal(kbc, (1, K), dtype=jnp.float32) * 0.1
    params = (w0, wl, bl, wc, bc)

    pred, cls, trans = eulernet_forward(x, params, act_function)
    jax.block_until_ready((pred, cls, trans))

    # Sanity check against pure-JAX reference.
    pred_r, cls_r, trans_r = _reference_forward(x, params, act_function)
    assert pred.shape == (N, K) and cls.shape == (N, K) and trans.shape == (N, d_hat, L + 1)
    assert jnp.allclose(pred, pred_r, atol=1e-5, rtol=1e-5)
    assert jnp.allclose(cls, cls_r, atol=1e-5)
    assert jnp.allclose(trans, trans_r, atol=1e-5)

    # Also exercise the binary (K == 1, sigmoid) hypothesis path.
    wc1 = jax.random.normal(kc, (d_hat, 1), dtype=jnp.float32) * 0.1
    bc1 = jax.random.normal(kbc, (1, 1), dtype=jnp.float32) * 0.1
    params1 = (w0, wl, bl, wc1, bc1)
    pred1, cls1, trans1 = eulernet_forward(x, params1, act_function)
    jax.block_until_ready((pred1, cls1, trans1))
    pred1_r, cls1_r, _ = _reference_forward(x, params1, act_function)
    assert jnp.allclose(pred1, pred1_r, atol=1e-5)
    assert jnp.allclose(cls1, cls1_r, atol=1e-5)

    print("KERNEL_OK")
</pallas_src>

<mosaic_0001>
module attributes {stable_mosaic.version = 11 : i64} {
  func.func @_eulernet_kernel(%arg0: i32, %arg1: memref<8x4xf32, #tpu.memory_space<vmem>>, %arg2: memref<4x32xf32, #tpu.memory_space<vmem>>, %arg3: memref<4x32x32xf32, #tpu.memory_space<vmem>>, %arg4: memref<4x1x32xf32, #tpu.memory_space<vmem>>, %arg5: memref<32x128xf32, #tpu.memory_space<vmem>>, %arg6: memref<1x128xf32, #tpu.memory_space<vmem>>, %arg7: memref<8x128xf32, #tpu.memory_space<vmem>>, %arg8: memref<8x160xf32, #tpu.memory_space<vmem>>) attributes {dimension_semantics = [#tpu.dimension_semantics<parallel>], iteration_bounds = array<i64: 1>, scalar_prefetch = 0 : i64, scratch_operands = 0 : i64, tpu.core_type = #tpu.core_type<tc>, window_params = [{transform_indices = @transform_0, window_bounds = array<i64: 8, 4>}, {pipeline_mode = #tpu.pipeline_mode<synchronous>, transform_indices = @transform_1, window_bounds = array<i64: 4, 32>}, {pipeline_mode = #tpu.pipeline_mode<synchronous>, transform_indices = @transform_2, window_bounds = array<i64: 4, 32, 32>}, {pipeline_mode = #tpu.pipeline_mode<synchronous>, transform_indices = @transform_3, window_bounds = array<i64: 4, 1, 32>}, {pipeline_mode = #tpu.pipeline_mode<synchronous>, transform_indices = @transform_4, window_bounds = array<i64: 32, 128>}, {pipeline_mode = #tpu.pipeline_mode<synchronous>, transform_indices = @transform_5, window_bounds = array<i64: 1, 128>}, {transform_indices = @transform_6, window_bounds = array<i64: 8, 128>}, {transform_indices = @transform_7, window_bounds = array<i64: 8, 160>}]} {
    %c0 = arith.constant 0 : index
    %c0_0 = arith.constant 0 : index
    %0 = vector.load %arg1[%c0, %c0_0] : memref<8x4xf32, #tpu.memory_space<vmem>>, vector<8x4xf32>
    %c0_1 = arith.constant 0 : index
    %c0_2 = arith.constant 0 : index
    %1 = vector.load %arg2[%c0_1, %c0_2] : memref<4x32xf32, #tpu.memory_space<vmem>>, vector<4x32xf32>
    %cst = arith.constant dense<0.000000e+00> : vector<8x32xf32>
    %2 = tpu.matmul %0, %1, %cst {dimension_numbers = #tpu.dot_dimension_numbers<[1], [0], [0], [1], [0, 0, 1, 1], [], []>} : vector<8x4xf32>, vector<4x32xf32>, vector<8x32xf32> -> vector<8x32xf32>
    %c0_3 = arith.constant 0 : index
    %c0_4 = arith.constant 0 : index
    %c0_5 = arith.constant 0 : index
    %3 = vector.load %arg3[%c0_3, %c0_4, %c0_5] : memref<4x32x32xf32, #tpu.memory_space<vmem>>, vector<1x32x32xf32>
    %4 = vector.shape_cast %3 : vector<1x32x32xf32> to vector<32x32xf32>
    %cst_6 = arith.constant dense<0.000000e+00> : vector<8x32xf32>
    %5 = tpu.matmul %2, %4, %cst_6 {dimension_numbers = #tpu.dot_dimension_numbers<[1], [0], [0], [1], [0, 0, 1, 1], [], []>} : vector<8x32xf32>, vector<32x32xf32>, vector<8x32xf32> -> vector<8x32xf32>
    %c0_7 = arith.constant 0 : index
    %c0_8 = arith.constant 0 : index
    %c0_9 = arith.constant 0 : index
    %6 = vector.load %arg4[%c0_7, %c0_8, %c0_9] : memref<4x1x32xf32, #tpu.memory_space<vmem>>, vector<1x1x32xf32>
    %7 = vector.shape_cast %6 : vector<1x1x32xf32> to vector<1x32xf32>
    %8 = vector.broadcast %7 : vector<1x32xf32> to vector<8x32xf32>
    %9 = arith.addf %5, %8 : vector<8x32xf32>
    %10 = math.tanh %9 : vector<8x32xf32>
    %cst_10 = arith.constant 5.000000e-02 : f32
    %11 = vector.broadcast %cst_10 : f32 to vector<8x32xf32>
    %12 = arith.mulf %11, %10 : vector<8x32xf32>
    %13 = arith.addf %2, %12 : vector<8x32xf32>
    %c1 = arith.constant 1 : index
    %c0_11 = arith.constant 0 : index
    %c0_12 = arith.constant 0 : index
    %14 = vector.load %arg3[%c1, %c0_11, %c0_12] : memref<4x32x32xf32, #tpu.memory_space<vmem>>, vector<1x32x32xf32>
    %15 = vector.shape_cast %14 : vector<1x32x32xf32> to vector<32x32xf32>
    %cst_13 = arith.constant dense<0.000000e+00> : vector<8x32xf32>
    %16 = tpu.matmul %13, %15, %cst_13 {dimension_numbers = #tpu.dot_dimension_numbers<[1], [0], [0], [1], [0, 0, 1, 1], [], []>} : vector<8x32xf32>, vector<32x32xf32>, vector<8x32xf32> -> vector<8x32xf32>
    %c1_14 = arith.constant 1 : index
    %c0_15 = arith.constant 0 : index
    %c0_16 = arith.constant 0 : index
    %17 = vector.load %arg4[%c1_14, %c0_15, %c0_16] : memref<4x1x32xf32, #tpu.memory_space<vmem>>, vector<1x1x32xf32>
    %18 = vector.shape_cast %17 : vector<1x1x32xf32> to vector<1x32xf32>
    %19 = vector.broadcast %18 : vector<1x32xf32> to vector<8x32xf32>
    %20 = arith.addf %16, %19 : vector<8x32xf32>
    %21 = math.tanh %20 : vector<8x32xf32>
    %cst_17 = arith.constant 5.000000e-02 : f32
    %22 = vector.broadcast %cst_17 : f32 to vector<8x32xf32>
    %23 = arith.mulf %22, %21 : vector<8x32xf32>
    %24 = arith.addf %13, %23 : vector<8x32xf32>
    %c2 = arith.constant 2 : index
    %c0_18 = arith.constant 0 : index
    %c0_19 = arith.constant 0 : index
    %25 = vector.load %arg3[%c2, %c0_18, %c0_19] : memref<4x32x32xf32, #tpu.memory_space<vmem>>, vector<1x32x32xf32>
    %26 = vector.shape_cast %25 : vector<1x32x32xf32> to vector<32x32xf32>
    %cst_20 = arith.constant dense<0.000000e+00> : vector<8x32xf32>
    %27 = tpu.matmul %24, %26, %cst_20 {dimension_numbers = #tpu.dot_dimension_numbers<[1], [0], [0], [1], [0, 0, 1, 1], [], []>} : vector<8x32xf32>, vector<32x32xf32>, vector<8x32xf32> -> vector<8x32xf32>
    %c2_21 = arith.constant 2 : index
    %c0_22 = arith.constant 0 : index
    %c0_23 = arith.constant 0 : index
    %28 = vector.load %arg4[%c2_21, %c0_22, %c0_23] : memref<4x1x32xf32, #tpu.memory_space<vmem>>, vector<1x1x32xf32>
    %29 = vector.shape_cast %28 : vector<1x1x32xf32> to vector<1x32xf32>
    %30 = vector.broadcast %29 : vector<1x32xf32> to vector<8x32xf32>
    %31 = arith.addf %27, %30 : vector<8x32xf32>
    %32 = math.tanh %31 : vector<8x32xf32>
    %cst_24 = arith.constant 5.000000e-02 : f32
    %33 = vector.broadcast %cst_24 : f32 to vector<8x32xf32>
    %34 = arith.mulf %33, %32 : vector<8x32xf32>
    %35 = arith.addf %24, %34 : vector<8x32xf32>
    %c3 = arith.constant 3 : index
    %c0_25 = arith.constant 0 : index
    %c0_26 = arith.constant 0 : index
    %36 = vector.load %arg3[%c3, %c0_25, %c0_26] : memref<4x32x32xf32, #tpu.memory_space<vmem>>, vector<1x32x32xf32>
    %37 = vector.shape_cast %36 : vector<1x32x32xf32> to vector<32x32xf32>
    %cst_27 = arith.constant dense<0.000000e+00> : vector<8x32xf32>
    %38 = tpu.matmul %35, %37, %cst_27 {dimension_numbers = #tpu.dot_dimension_numbers<[1], [0], [0], [1], [0, 0, 1, 1], [], []>} : vector<8x32xf32>, vector<32x32xf32>, vector<8x32xf32> -> vector<8x32xf32>
    %c3_28 = arith.constant 3 : index
    %c0_29 = arith.constant 0 : index
    %c0_30 = arith.constant 0 : index
    %39 = vector.load %arg4[%c3_28, %c0_29, %c0_30] : memref<4x1x32xf32, #tpu.memory_space<vmem>>, vector<1x1x32xf32>
    %40 = vector.shape_cast %39 : vector<1x1x32xf32> to vector<1x32xf32>
    %41 = vector.broadcast %40 : vector<1x32xf32> to vector<8x32xf32>
    %42 = arith.addf %38, %41 : vector<8x32xf32>
    %43 = math.tanh %42 : vector<8x32xf32>
    %cst_31 = arith.constant 5.000000e-02 : f32
    %44 = vector.broadcast %cst_31 : f32 to vector<8x32xf32>
    %45 = arith.mulf %44, %43 : vector<8x32xf32>
    %46 = arith.addf %35, %45 : vector<8x32xf32>
    %47 = tpu.concatenate %2, %13, %24, %35, %46 in 1 : vector<8x32xf32>, vector<8x32xf32>, vector<8x32xf32>, vector<8x32xf32>, vector<8x32xf32> -> vector<8x160xf32>
    %c0_32 = arith.constant 0 : index
    %c0_33 = arith.constant 0 : index
    %48 = vector.load %arg8[%c0_32, %c0_33] : memref<8x160xf32, #tpu.memory_space<vmem>>, vector<8x160xf32>
    tpu.vector_store %arg8[%c0_32, %c0_33], %47 {strides = array<i32>} : memref<8x160xf32, #tpu.memory_space<vmem>>, vector<8x160xf32>,
    %c0_34 = arith.constant 0 : index
    %c0_35 = arith.constant 0 : index
    %49 = vector.load %arg5[%c0_34, %c0_35] : memref<32x128xf32, #tpu.memory_space<vmem>>, vector<32x128xf32>
    %cst_36 = arith.constant dense<0.000000e+00> : vector<8x128xf32>
    %50 = tpu.matmul %46, %49, %cst_36 {dimension_numbers = #tpu.dot_dimension_numbers<[1], [0], [0], [1], [0, 0, 1, 1], [], []>} : vector<8x32xf32>, vector<32x128xf32>, vector<8x128xf32> -> vector<8x128xf32>
    %c0_37 = arith.constant 0 : index
    %c0_38 = arith.constant 0 : index
    %51 = vector.load %arg6[%c0_37, %c0_38] : memref<1x128xf32, #tpu.memory_space<vmem>>, vector<1x128xf32>
    %52 = vector.broadcast %51 : vector<1x128xf32> to vector<8x128xf32>
    %53 = arith.addf %50, %52 : vector<8x128xf32>
    %c0_39 = arith.constant 0 : index
    %c0_40 = arith.constant 0 : index
    %54 = vector.load %arg7[%c0_39, %c0_40] : memref<8x128xf32, #tpu.memory_space<vmem>>, vector<8x128xf32>
    tpu.vector_store %arg7[%c0_39, %c0_40], %53 {strides = array<i32>} : memref<8x128xf32, #tpu.memory_space<vmem>>, vector<8x128xf32>,
    return
  }
  func.func @transform_0(%arg0: i32) -> (i32, i32) {
    %c0_i32 = arith.constant 0 : i32
    %c0_i32_0 = arith.constant 0 : i32
    return %arg0, %c0_i32 : i32, i32
  }
  func.func @transform_1(%arg0: i32) -> (i32, i32) {
    %c0_i32 = arith.constant 0 : i32
    %c0_i32_0 = arith.constant 0 : i32
    %c0_i32_1 = arith.constant 0 : i32
    return %c0_i32, %c0_i32_0 : i32, i32
  }
  func.func @transform_2(%arg0: i32) -> (i32, i32, i32) {
    %c0_i32 = arith.constant 0 : i32
    %c0_i32_0 = arith.constant 0 : i32
    %c0_i32_1 = arith.constant 0 : i32
    %c0_i32_2 = arith.constant 0 : i32
    return %c0_i32, %c0_i32_0, %c0_i32_1 : i32, i32, i32
  }
  func.func @transform_3(%arg0: i32) -> (i32, i32, i32) {
    %c0_i32 = arith.constant 0 : i32
    %c0_i32_0 = arith.constant 0 : i32
    %c0_i32_1 = arith.constant 0 : i32
    %c0_i32_2 = arith.constant 0 : i32
    return %c0_i32, %c0_i32_0, %c0_i32_1 : i32, i32, i32
  }
  func.func @transform_4(%arg0: i32) -> (i32, i32) {
    %c0_i32 = arith.constant 0 : i32
    %c0_i32_0 = arith.constant 0 : i32
    %c0_i32_1 = arith.constant 0 : i32
    return %c0_i32, %c0_i32_0 : i32, i32
  }
  func.func @transform_5(%arg0: i32) -> (i32, i32) {
    %c0_i32 = arith.constant 0 : i32
    %c0_i32_0 = arith.constant 0 : i32
    %c0_i32_1 = arith.constant 0 : i32
    return %c0_i32, %c0_i32_0 : i32, i32
  }
  func.func @transform_6(%arg0: i32) -> (i32, i32) {
    %c0_i32 = arith.constant 0 : i32
    %c0_i32_0 = arith.constant 0 : i32
    return %arg0, %c0_i32 : i32, i32
  }
  func.func @transform_7(%arg0: i32) -> (i32, i32) {
    %c0_i32 = arith.constant 0 : i32
    %c0_i32_0 = arith.constant 0 : i32
    return %arg0, %c0_i32 : i32, i32
  }
}

</mosaic_0001>

<llo_original>
// kernel: tpu_custom_call.1
$region0: #{tpu_custom_call.1}
  #allocation0 [shape = 'u32[]', space=smem, size = 0x4, offset = 0x4, fixed_abs, tag = 'smem constant byte address 0x4 - core index']
  #allocation1 [shape = 'u32[144,128]{1,0:T(1,128)}', space=vmem, size = 0x12000, scoped, tag = 'internal scratch']
  %s0 = inlined_call_operand.vmem [shape: f32[8,4], index: 0, kind: input, shape index: {}]
  %s1 = inlined_call_operand.vmem [shape: f32[4,32], index: 1, kind: input, shape index: {}]
  %s2 = inlined_call_operand.hbm [shape: f32[4,32,32], index: 2, kind: input, shape index: {}]
  %s3 = inlined_call_operand.vmem [shape: f32[4,1,32], index: 3, kind: input, shape index: {}]
  %s4 = inlined_call_operand.hbm [shape: f32[32,128], index: 4, kind: input, shape index: {}]
  %s5 = inlined_call_operand.vmem [shape: f32[1,128], index: 5, kind: input, shape index: {}]
  %s6 = inlined_call_operand.hbm [shape: f32[8,128], index: 6, kind: output, shape index: {0}]
  %s7 = inlined_call_operand.hbm [shape: f32[8,160], index: 7, kind: output, shape index: {1}]
  %8 = xla_tuple %s6, %s7
  %s9 = sld [smem:[#allocation0]]
  $region50: #{tpu_custom_call.1} parent=0
    _
  %s11 = ssub.s32 1, %s9
  %s12 = scalar_select 0, %s11, %s9
  $region1: #{tpu_custom_call.1} parent=0
    #allocation2 [shape = 'u8[65536]{0}', space=vmem, size = 0x10000, scoped, tag = 'input window, operand 2, single buffered']
    #allocation3 [shape = 's32[1]{0}', space=sflag, size = 0x4, scoped, tag = 'scoped memory for tpu_custom_call.1']
    #allocation4 [shape = 's32[1]{0}', space=sflag, size = 0x4, scoped, tag = 'scoped memory for tpu_custom_call.1']
    #allocation5 [shape = 'u8[16384]{0}', space=vmem, size = 0x4000, scoped, tag = 'input window, operand 4, single buffered']
    #allocation6 [shape = 's32[1]{0}', space=sflag, size = 0x4, scoped, tag = 'scoped memory for tpu_custom_call.1']
    #allocation7 [shape = 'u8[4096]{0}', space=vmem, size = 0x1000, scoped, tag = 'output window, operand 0, single buffered']
    #allocation8 [shape = 'u8[8192]{0}', space=vmem, size = 0x2000, scoped, tag = 'output window, operand 1, single buffered']
    #allocation9 [shape = 's32[1]{0}', space=sflag, size = 0x4, scoped, tag = 'scoped memory for tpu_custom_call.1']
    %13 = vsyncpa [#allocation3], 0
    %14 = vsyncpa [#allocation6], 0
    %15 = vsyncpa [#allocation4], 0
    %16 = vsyncpa [#allocation9], 0
    // Predicated region
    $region2: #{tpu_custom_call.1} parent=1 // pred_check
      _
    $region3: #{tpu_custom_call.1} parent=1 // pred_check_branch
      %18 = sbr.rel (0) target = $region5
    $region4: #{tpu_custom_call.1} parent=1 // pred_region
      _
    $region5: #{tpu_custom_call.1} parent=1 // pred_fallthru
      _
    // Predicated region
    $region6: #{tpu_custom_call.1} parent=1 // pred_check
      _
    $region7: #{tpu_custom_call.1} parent=1 // pred_check_branch
      %20 = sbr.rel (0) target = $region9
    $region8: #{tpu_custom_call.1} parent=1 // pred_region
      _
    $region9: #{tpu_custom_call.1} parent=1 // pred_fallthru
      _
    // Predicated region
    $region10: #{tpu_custom_call.1} parent=1 // pred_check
      _
    $region11: #{tpu_custom_call.1} parent=1 // pred_check_branch
      %22 = sbr.rel (0) target = $region13
    $region12: #{tpu_custom_call.1} parent=1 // pred_region
      %s24 = ssub.s32 2048, 2048
      %25 = vsyncadd [#allocation3], %s24
      %s26 = sshll.u32 [#allocation2], 4
      %s27 = int_to_ptr.vmem [resolvable:$true] %s26
      %32 = dma.hbm_to_vmem [thread:$0]  %s2, 2048, %s27, [#allocation3], 128, 128, 8
    $region13: #{tpu_custom_call.1} parent=1 // pred_fallthru
      _
    // Predicated region
    $region14: #{tpu_custom_call.1} parent=1 // pred_check
      _
    $region15: #{tpu_custom_call.1} parent=1 // pred_check_branch
      %34 = sbr.rel (0) target = $region17
    $region16: #{tpu_custom_call.1} parent=1 // pred_region
      _
    $region17: #{tpu_custom_call.1} parent=1 // pred_fallthru
      _
    // Predicated region
    $region18: #{tpu_custom_call.1} parent=1 // pred_check
      _
    $region19: #{tpu_custom_call.1} parent=1 // pred_check_branch
      %36 = sbr.rel (0) target = $region21
    $region20: #{tpu_custom_call.1} parent=1 // pred_region
      %s38 = ssub.s32 512, 512
      %39 = vsyncadd [#allocation6], %s38
      %s40 = sshll.u32 [#allocation5], 4
      %s41 = int_to_ptr.vmem [resolvable:$true] %s40
      %46 = dma.hbm_to_vmem [thread:$0]  %s4, 512, %s41, [#allocation6], 128, 128, 8
    $region21: #{tpu_custom_call.1} parent=1 // pred_fallthru
      _
    // Predicated region
    $region22: #{tpu_custom_call.1} parent=1 // pred_check
      _
    $region23: #{tpu_custom_call.1} parent=1 // pred_check_branch
      %48 = sbr.rel (0) target = $region25
    $region24: #{tpu_custom_call.1} parent=1 // pred_region
      _
    $region25: #{tpu_custom_call.1} parent=1 // pred_fallthru
      _
    // Predicated region
    $region26: #{tpu_custom_call.1} parent=1 // pred_check
      _
    $region27: #{tpu_custom_call.1} parent=1 // pred_check_branch
      %50 = sbr.rel (0) target = $region29
    $region28: #{tpu_custom_call.1} parent=1 // pred_region
      %51 = dma.done [#allocation3], 2048
    $region29: #{tpu_custom_call.1} parent=1 // pred_fallthru
      _
    // Predicated region
    $region30: #{tpu_custom_call.1} parent=1 // pred_check
      _
    $region31: #{tpu_custom_call.1} parent=1 // pred_check_branch
      %53 = sbr.rel (0) target = $region33
    $region32: #{tpu_custom_call.1} parent=1 // pred_region
      %54 = dma.done [#allocation6], 512
    $region33: #{tpu_custom_call.1} parent=1 // pred_fallthru
      _
    %v55 = vld [vmem:[%s0] sm:$0xff]
    %v56 = vld [vmem:[%s1] sm:$0xf]
    %vm57 = vcmask 31744
    %v59 = vsel %vm57, %v55, 0
    %vm61 = vcmask 1043456
    %v63 = vsel %vm61, %v56, 0
    %65 = vmatprep.subr.mxu0 0.0
    %66 = vmatpush1.msra.mxu0 %v63
    %67 = vmatprep.subr.mxu0 0.0
    %68 = vmatpush1.msra.mxu0 0.0
    %69 = vmatprep.subr.mxu0 0.0
    %70 = vmatpush1.msra.mxu0 0.0
    %71 = vmatprep.subr.mxu0 0.0
    %72 = vmatpush1.msra.mxu0 0.0
    %73 = vmatprep.subr.mxu0 0.0
    %74 = vmatpush1.msra.mxu0 0.0
    %75 = vmatprep.subr.mxu0 0.0
    %76 = vmatpush1.msra.mxu0 0.0
    %77 = vmatprep.subr.mxu0 0.0
    %78 = vmatpush1.msra.mxu0 0.0
    %79 = vmatprep.subr.mxu0 0.0
    %80 = vmatpush1.msra.mxu0 0.0
    %81 = vmatprep.subr.mxu0 0.0
    %82 = vmatpush1.msra.mxu0 0.0
    %83 = vmatprep.subr.mxu0 0.0
    %84 = vmatpush1.msra.mxu0 0.0
    %85 = vmatprep.subr.mxu0 0.0
    %86 = vmatpush1.msra.mxu0 0.0
    %87 = vmatprep.subr.mxu0 0.0
    %88 = vmatpush1.msra.mxu0 0.0
    %89 = vmatprep.subr.mxu0 0.0
    %90 = vmatpush1.msra.mxu0 0.0
    %91 = vmatprep.subr.mxu0 0.0
    %92 = vmatpush1.msra.mxu0 0.0
    %93 = vmatprep.subr.mxu0 0.0
    %94 = vmatpush1.msra.mxu0 0.0
    %95 = vmatprep.subr.mxu0 0.0
    %96 = vmatpush1.msra.mxu0 0.0
    %97 = vmatprep.subr.mxu0 0.0
    %98 = vmatpush1.msra.mxu0 0.0
    %99 = vmatprep.subr.mxu0 0.0
    %100 = vmatpush1.msra.mxu0 0.0
    %101 = vmatprep.subr.mxu0 0.0
    %102 = vmatpush1.msra.mxu0 0.0
    %103 = vmatprep.subr.mxu0 0.0
    %104 = vmatpush1.msra.mxu0 0.0
    %105 = vmatprep.subr.mxu0 0.0
    %106 = vmatpush1.msra.mxu0 0.0
    %107 = vmatprep.subr.mxu0 0.0
    %108 = vmatpush1.msra.mxu0 0.0
    %109 = vmatprep.subr.mxu0 0.0
    %110 = vmatpush1.msra.mxu0 0.0
    %111 = vmatprep.subr.mxu0 0.0
    %112 = vmatpush1.msra.mxu0 0.0
    %113 = vmatprep.subr.mxu0 0.0
    %114 = vmatpush1.msra.mxu0 0.0
    %115 = vmatprep.subr.mxu0 0.0
    %116 = vmatpush1.msra.mxu0 0.0
    %117 = vmatprep.subr.mxu0 0.0
    %118 = vmatpush1.msra.mxu0 0.0
    %119 = vmatprep.subr.mxu0 0.0
    %120 = vmatpush1.msra.mxu0 0.0
    %121 = vmatprep.subr.mxu0 0.0
    %122 = vmatpush1.msra.mxu0 0.0
    %123 = vmatprep.subr.mxu0 0.0
    %124 = vmatpush1.msra.mxu0 0.0
    %125 = vmatprep.subr.mxu0 0.0
    %126 = vmatpush1.msra.mxu0 0.0
    %127 = vmatprep.subr.mxu0 0.0
    %128 = vmatpush1.msra.mxu0 0.0
    %129 = vmatprep.mubr.f32.mxu0 0.0
    %130 = vmatmul.mubr.f32.gmra.mrb[0].mxu0 %v59
    %v131 = vpop.f32.mrb[0].mxu0
    %v132 = vadd.f32 0.0, %v131
    %v133 = vpop.f32.mrb[0].mxu0
    %134 = vdwg.mxu0
    %v135 = vld [vmem:[#allocation2] sm:$0xff]
    %v136 = vld [vmem:[#allocation2 + $0x8] sm:$0xff]
    %v137 = vld [vmem:[#allocation2 + $0x10] sm:$0xff]
    %v138 = vld [vmem:[#allocation2 + $0x18] sm:$0xff]
    %v139 = vld [vmem:[%s3] sm:$0x1]
    %v141 = vlaneseq
    %v142 = vshrl.u32 %v141, 7
    %v143 = vsub.s32 0, %v142
    %v144 = vrot.slane %v139, %v143
    %vm146 = vcmask 261120
    %v148 = vsel %vm146, %v132, 0
    %150 = vmatprep.subr.mxu0 0.0
    %151 = vmatpush1.msra.mxu0 %v135
    %152 = vmatprep.subr.mxu0 0.0
    %153 = vmatpush1.msra.mxu0 %v136
    %154 = vmatprep.subr.mxu0 0.0
    %155 = vmatpush1.msra.mxu0 %v137
    %156 = vmatprep.subr.mxu0 0.0
    %157 = vmatpush1.msra.mxu0 %v138
    %158 = vmatprep.subr.mxu0 0.0
    %159 = vmatpush1.msra.mxu0 0.0
    %160 = vmatprep.subr.mxu0 0.0
    %161 = vmatpush1.msra.mxu0 0.0
    %162 = vmatprep.subr.mxu0 0.0
    %163 = vmatpush1.msra.mxu0 0.0
    %164 = vmatprep.subr.mxu0 0.0
    %165 = vmatpush1.msra.mxu0 0.0
    %166 = vmatprep.subr.mxu0 0.0
    %167 = vmatpush1.msra.mxu0 0.0
    %168 = vmatprep.subr.mxu0 0.0
    %169 = vmatpush1.msra.mxu0 0.0
    %170 = vmatprep.subr.mxu0 0.0
    %171 = vmatpush1.msra.mxu0 0.0
    %172 = vmatprep.subr.mxu0 0.0
    %173 = vmatpush1.msra.mxu0 0.0
    %174 = vmatprep.subr.mxu0 0.0
    %175 = vmatpush1.msra.mxu0 0.0
    %176 = vmatprep.subr.mxu0 0.0
    %177 = vmatpush1.msra.mxu0 0.0
    %178 = vmatprep.subr.mxu0 0.0
    %179 = vmatpush1.msra.mxu0 0.0
    %180 = vmatprep.subr.mxu0 0.0
    %181 = vmatpush1.msra.mxu0 0.0
    %182 = vmatprep.subr.mxu0 0.0
    %183 = vmatpush1.msra.mxu0 0.0
    %184 = vmatprep.subr.mxu0 0.0
    %185 = vmatpush1.msra.mxu0 0.0
    %186 = vmatprep.subr.mxu0 0.0
    %187 = vmatpush1.msra.mxu0 0.0
    %188 = vmatprep.subr.mxu0 0.0
    %189 = vmatpush1.msra.mxu0 0.0
    %190 = vmatprep.subr.mxu0 0.0
    %191 = vmatpush1.msra.mxu0 0.0
    %192 = vmatprep.subr.mxu0 0.0
    %193 = vmatpush1.msra.mxu0 0.0
    %194 = vmatprep.subr.mxu0 0.0
    %195 = vmatpush1.msra.mxu0 0.0
    %196 = vmatprep.subr.mxu0 0.0
    %197 = vmatpush1.msra.mxu0 0.0
    %198 = vmatprep.subr.mxu0 0.0
    %199 = vmatpush1.msra.mxu0 0.0
    %200 = vmatprep.subr.mxu0 0.0
    %201 = vmatpush1.msra.mxu0 0.0
    %202 = vmatprep.subr.mxu0 0.0
    %203 = vmatpush1.msra.mxu0 0.0
    %204 = vmatprep.subr.mxu0 0.0
    %205 = vmatpush1.msra.mxu0 0.0
    %206 = vmatprep.subr.mxu0 0.0
    %207 = vmatpush1.msra.mxu0 0.0
    %208 = vmatprep.subr.mxu0 0.0
    %209 = vmatpush1.msra.mxu0 0.0
    %210 = vmatprep.subr.mxu0 0.0
    %211 = vmatpush1.msra.mxu0 0.0
    %212 = vmatprep.subr.mxu0 0.0
    %213 = vmatpush1.msra.mxu0 0.0
    %214 = vmatprep.mubr.f32.mxu0 0.0
    %215 = vmatmul.mubr.f32.gmra.mrb[0].mxu0 %v148
    %v216 = vpop.f32.mrb[0].mxu0
    %v217 = vadd.f32 %v144, %v216
    %v218 = vpop.f32.mrb[0].mxu0
    %219 = vdwg.mxu0
    %v220 = vtanh.pop %v217
    %v221 = vmul.f32 %v220, 0.05
    %v222 = vadd.f32 %v132, %v221
    %s223 = scalar_lea.vmem [#allocation2], 32
    %v224 = vld [vmem:[%s223] sm:$0xff]
    %v225 = vld [vmem:[%s223 + $0x8] sm:$0xff]
    %v226 = vld [vmem:[%s223 + $0x10] sm:$0xff]
    %v227 = vld [vmem:[%s223 + $0x18] sm:$0xff]
    %s228 = scalar_lea.vmem %s3, 1
    %v229 = vld [vmem:[%s228] sm:$0x1]
    %v231 = vlaneseq
    %v232 = vshrl.u32 %v231, 7
    %v233 = vsub.s32 0, %v232
    %v234 = vrot.slane %v229, %v233
    %v237 = vsel %vm146, %v222, 0
    %239 = vmatprep.subr.mxu0 0.0
    %240 = vmatpush1.msra.mxu0 %v224
    %241 = vmatprep.subr.mxu0 0.0
    %242 = vmatpush1.msra.mxu0 %v225
    %243 = vmatprep.subr.mxu0 0.0
    %244 = vmatpush1.msra.mxu0 %v226
    %245 = vmatprep.subr.mxu0 0.0
    %246 = vmatpush1.msra.mxu0 %v227
    %247 = vmatprep.subr.mxu0 0.0
    %248 = vmatpush1.msra.mxu0 0.0
    %249 = vmatprep.subr.mxu0 0.0
    %250 = vmatpush1.msra.mxu0 0.0
    %251 = vmatprep.subr.mxu0 0.0
    %252 = vmatpush1.msra.mxu0 0.0
    %253 = vmatprep.subr.mxu0 0.0
    %254 = vmatpush1.msra.mxu0 0.0
    %255 = vmatprep.subr.mxu0 0.0
    %256 = vmatpush1.msra.mxu0 0.0
    %257 = vmatprep.subr.mxu0 0.0
    %258 = vmatpush1.msra.mxu0 0.0
    %259 = vmatprep.subr.mxu0 0.0
    %260 = vmatpush1.msra.mxu0 0.0
    %261 = vmatprep.subr.mxu0 0.0
    %262 = vmatpush1.msra.mxu0 0.0
    %263 = vmatprep.subr.mxu0 0.0
    %264 = vmatpush1.msra.mxu0 0.0
    %265 = vmatprep.subr.mxu0 0.0
    %266 = vmatpush1.msra.mxu0 0.0
    %267 = vmatprep.subr.mxu0 0.0
    %268 = vmatpush1.msra.mxu0 0.0
    %269 = vmatprep.subr.mxu0 0.0
    %270 = vmatpush1.msra.mxu0 0.0
    %271 = vmatprep.subr.mxu0 0.0
    %272 = vmatpush1.msra.mxu0 0.0
    %273 = vmatprep.subr.mxu0 0.0
    %274 = vmatpush1.msra.mxu0 0.0
    %275 = vmatprep.subr.mxu0 0.0
    %276 = vmatpush1.msra.mxu0 0.0
    %277 = vmatprep.subr.mxu0 0.0
    %278 = vmatpush1.msra.mxu0 0.0
    %279 = vmatprep.subr.mxu0 0.0
    %280 = vmatpush1.msra.mxu0 0.0
    %281 = vmatprep.subr.mxu0 0.0
    %282 = vmatpush1.msra.mxu0 0.0
    %283 = vmatprep.subr.mxu0 0.0
    %284 = vmatpush1.msra.mxu0 0.0
    %285 = vmatprep.subr.mxu0 0.0
    %286 = vmatpush1.msra.mxu0 0.0
    %287 = vmatprep.subr.mxu0 0.0
    %288 = vmatpush1.msra.mxu0 0.0
    %289 = vmatprep.subr.mxu0 0.0
    %290 = vmatpush1.msra.mxu0 0.0
    %291 = vmatprep.subr.mxu0 0.0
    %292 = vmatpush1.msra.mxu0 0.0
    %293 = vmatprep.subr.mxu0 0.0
    %294 = vmatpush1.msra.mxu0 0.0
    %295 = vmatprep.subr.mxu0 0.0
    %296 = vmatpush1.msra.mxu0 0.0
    %297 = vmatprep.subr.mxu0 0.0
    %298 = vmatpush1.msra.mxu0 0.0
    %299 = vmatprep.subr.mxu0 0.0
    %300 = vmatpush1.msra.mxu0 0.0
    %301 = vmatprep.subr.mxu0 0.0
    %302 = vmatpush1.msra.mxu0 0.0
    %303 = vmatprep.mubr.f32.mxu0 0.0
    %304 = vmatmul.mubr.f32.gmra.mrb[0].mxu0 %v237
    %v305 = vpop.f32.mrb[0].mxu0
    %v306 = vadd.f32 %v234, %v305
    %v307 = vpop.f32.mrb[0].mxu0
    %308 = vdwg.mxu0
    %v309 = vtanh.pop %v306
    %v310 = vmul.f32 %v309, 0.05
    %v311 = vadd.f32 %v222, %v310
    %s312 = scalar_lea.vmem [#allocation2], 64
    %v313 = vld [vmem:[%s312] sm:$0xff]
    %v314 = vld [vmem:[%s312 + $0x8] sm:$0xff]
    %v315 = vld [vmem:[%s312 + $0x10] sm:$0xff]
    %v316 = vld [vmem:[%s312 + $0x18] sm:$0xff]
    %s317 = scalar_lea.vmem %s3, 2
    %v318 = vld [vmem:[%s317] sm:$0x1]
    %v320 = vlaneseq
    %v321 = vshrl.u32 %v320, 7
    %v322 = vsub.s32 0, %v321
    %v323 = vrot.slane %v318, %v322
    %v326 = vsel %vm146, %v311, 0
    %328 = vmatprep.subr.mxu0 0.0
    %329 = vmatpush1.msra.mxu0 %v313
    %330 = vmatprep.subr.mxu0 0.0
    %331 = vmatpush1.msra.mxu0 %v314
    %332 = vmatprep.subr.mxu0 0.0
    %333 = vmatpush1.msra.mxu0 %v315
    %334 = vmatprep.subr.mxu0 0.0
    %335 = vmatpush1.msra.mxu0 %v316
    %336 = vmatprep.subr.mxu0 0.0
    %337 = vmatpush1.msra.mxu0 0.0
    %338 = vmatprep.subr.mxu0 0.0
    %339 = vmatpush1.msra.mxu0 0.0
    %340 = vmatprep.subr.mxu0 0.0
    %341 = vmatpush1.msra.mxu0 0.0
    %342 = vmatprep.subr.mxu0 0.0
    %343 = vmatpush1.msra.mxu0 0.0
    %344 = vmatprep.subr.mxu0 0.0
    %345 = vmatpush1.msra.mxu0 0.0
    %346 = vmatprep.subr.mxu0 0.0
    %347 = vmatpush1.msra.mxu0 0.0
    %348 = vmatprep.subr.mxu0 0.0
    %349 = vmatpush1.msra.mxu0 0.0
    %350 = vmatprep.subr.mxu0 0.0
    %351 = vmatpush1.msra.mxu0 0.0
    %352 = vmatprep.subr.mxu0 0.0
    %353 = vmatpush1.msra.mxu0 0.0
    %354 = vmatprep.subr.mxu0 0.0
    %355 = vmatpush1.msra.mxu0 0.0
    %356 = vmatprep.subr.mxu0 0.0
    %357 = vmatpush1.msra.mxu0 0.0
    %358 = vmatprep.subr.mxu0 0.0
    %359 = vmatpush1.msra.mxu0 0.0
    %360 = vmatprep.subr.mxu0 0.0
    %361 = vmatpush1.msra.mxu0 0.0
    %362 = vmatprep.subr.mxu0 0.0
    %363 = vmatpush1.msra.mxu0 0.0
    %364 = vmatprep.subr.mxu0 0.0
    %365 = vmatpush1.msra.mxu0 0.0
    %366 = vmatprep.subr.mxu0 0.0
    %367 = vmatpush1.msra.mxu0 0.0
    %368 = vmatprep.subr.mxu0 0.0
    %369 = vmatpush1.msra.mxu0 0.0
    %370 = vmatprep.subr.mxu0 0.0
    %371 = vmatpush1.msra.mxu0 0.0
    %372 = vmatprep.subr.mxu0 0.0
    %373 = vmatpush1.msra.mxu0 0.0
    %374 = vmatprep.subr.mxu0 0.0
    %375 = vmatpush1.msra.mxu0 0.0
    %376 = vmatprep.subr.mxu0 0.0
    %377 = vmatpush1.msra.mxu0 0.0
    %378 = vmatprep.subr.mxu0 0.0
    %379 = vmatpush1.msra.mxu0 0.0
    %380 = vmatprep.subr.mxu0 0.0
    %381 = vmatpush1.msra.mxu0 0.0
    %382 = vmatprep.subr.mxu0 0.0
    %383 = vmatpush1.msra.mxu0 0.0
    %384 = vmatprep.subr.mxu0 0.0
    %385 = vmatpush1.msra.mxu0 0.0
    %386 = vmatprep.subr.mxu0 0.0
    %387 = vmatpush1.msra.mxu0 0.0
    %388 = vmatprep.subr.mxu0 0.0
    %389 = vmatpush1.msra.mxu0 0.0
    %390 = vmatprep.subr.mxu0 0.0
    %391 = vmatpush1.msra.mxu0 0.0
    %392 = vmatprep.mubr.f32.mxu0 0.0
    %393 = vmatmul.mubr.f32.gmra.mrb[0].mxu0 %v326
    %v394 = vpop.f32.mrb[0].mxu0
    %v395 = vadd.f32 %v323, %v394
    %v396 = vpop.f32.mrb[0].mxu0
    %397 = vdwg.mxu0
    %v398 = vtanh.pop %v395
    %v399 = vmul.f32 %v398, 0.05
    %v400 = vadd.f32 %v311, %v399
    %s401 = scalar_lea.vmem [#allocation2], 96
    %v402 = vld [vmem:[%s401] sm:$0xff]
    %v403 = vld [vmem:[%s401 + $0x8] sm:$0xff]
    %v404 = vld [vmem:[%s401 + $0x10] sm:$0xff]
    %v405 = vld [vmem:[%s401 + $0x18] sm:$0xff]
    %s406 = scalar_lea.vmem %s3, 3
    %v407 = vld [vmem:[%s406] sm:$0x1]
    %v409 = vlaneseq
    %v410 = vshrl.u32 %v409, 7
    %v411 = vsub.s32 0, %v410
    %v412 = vrot.slane %v407, %v411
    %v415 = vsel %vm146, %v400, 0
    %417 = vmatprep.subr.mxu0 0.0
    %418 = vmatpush1.msra.mxu0 %v402
    %419 = vmatprep.subr.mxu0 0.0
    %420 = vmatpush1.msra.mxu0 %v403
    %421 = vmatprep.subr.mxu0 0.0
    %422 = vmatpush1.msra.mxu0 %v404
    %423 = vmatprep.subr.mxu0 0.0
    %424 = vmatpush1.msra.mxu0 %v405
    %425 = vmatprep.subr.mxu0 0.0
    %426 = vmatpush1.msra.mxu0 0.0
    %427 = vmatprep.subr.mxu0 0.0
    %428 = vmatpush1.msra.mxu0 0.0
    %429 = vmatprep.subr.mxu0 0.0
    %430 = vmatpush1.msra.mxu0 0.0
    %431 = vmatprep.subr.mxu0 0.0
    %432 = vmatpush1.msra.mxu0 0.0
    %433 = vmatprep.subr.mxu0 0.0
    %434 = vmatpush1.msra.mxu0 0.0
    %435 = vmatprep.subr.mxu0 0.0
    %436 = vmatpush1.msra.mxu0 0.0
    %437 = vmatprep.subr.mxu0 0.0
    %438 = vmatpush1.msra.mxu0 0.0
    %439 = vmatprep.subr.mxu0 0.0
    %440 = vmatpush1.msra.mxu0 0.0
    %441 = vmatprep.subr.mxu0 0.0
    %442 = vmatpush1.msra.mxu0 0.0
    %443 = vmatprep.subr.mxu0 0.0
    %444 = vmatpush1.msra.mxu0 0.0
    %445 = vmatprep.subr.mxu0 0.0
    %446 = vmatpush1.msra.mxu0 0.0
    %447 = vmatprep.subr.mxu0 0.0
    %448 = vmatpush1.msra.mxu0 0.0
    %449 = vmatprep.subr.mxu0 0.0
    %450 = vmatpush1.msra.mxu0 0.0
    %451 = vmatprep.subr.mxu0 0.0
    %452 = vmatpush1.msra.mxu0 0.0
    %453 = vmatprep.subr.mxu0 0.0
    %454 = vmatpush1.msra.mxu0 0.0
    %455 = vmatprep.subr.mxu0 0.0
    %456 = vmatpush1.msra.mxu0 0.0
    %457 = vmatprep.subr.mxu0 0.0
    %458 = vmatpush1.msra.mxu0 0.0
    %459 = vmatprep.subr.mxu0 0.0
    %460 = vmatpush1.msra.mxu0 0.0
    %461 = vmatprep.subr.mxu0 0.0
    %462 = vmatpush1.msra.mxu0 0.0
    %463 = vmatprep.subr.mxu0 0.0
    %464 = vmatpush1.msra.mxu0 0.0
    %465 = vmatprep.subr.mxu0 0.0
    %466 = vmatpush1.msra.mxu0 0.0
    %467 = vmatprep.subr.mxu0 0.0
    %468 = vmatpush1.msra.mxu0 0.0
    %469 = vmatprep.subr.mxu0 0.0
    %470 = vmatpush1.msra.mxu0 0.0
    %471 = vmatprep.subr.mxu0 0.0
    %472 = vmatpush1.msra.mxu0 0.0
    %473 = vmatprep.subr.mxu0 0.0
    %474 = vmatpush1.msra.mxu0 0.0
    %475 = vmatprep.subr.mxu0 0.0
    %476 = vmatpush1.msra.mxu0 0.0
    %477 = vmatprep.subr.mxu0 0.0
    %478 = vmatpush1.msra.mxu0 0.0
    %479 = vmatprep.subr.mxu0 0.0
    %480 = vmatpush1.msra.mxu0 0.0
    %481 = vmatprep.mubr.f32.mxu0 0.0
    %482 = vmatmul.mubr.f32.gmra.mrb[0].mxu0 %v415
    %v483 = vpop.f32.mrb[0].mxu0
    %v484 = vadd.f32 %v412, %v483
    %v485 = vpop.f32.mrb[0].mxu0
    %486 = vdwg.mxu0
    %v487 = vtanh.pop %v484
    %v488 = vmul.f32 %v487, 0.05
    %v489 = vadd.f32 %v400, %v488
    %490 = vrot.lane.b32.xlu0 %v222, 32
    %v491 = vpop.permute.xlu0 %490
    %493 = vrot.lane.b32.xlu0 %v311, 64
    %v494 = vpop.permute.xlu0 %493
    %496 = vrot.lane.b32.xlu0 %v400, 96
    %v497 = vpop.permute.xlu0 %496
    %v499 = vsel %vm146, %v132, %v491
    %vm500 = vcmask 523264
    %v501 = vsel %vm500, %v499, %v494
    %vm502 = vcmask 785408
    %v503 = vsel %vm502, %v501, %v497
    %504 = vst [vmem:[#allocation8] sm:$0xff] %v503
    %505 = vst.msk [vmem:[#allocation8 + $0x8] sm:$0xff] %vm146, %v489
    %v506 = vld [vmem:[#allocation5] sm:$0xff]
    %v507 = vld [vmem:[#allocation5 + $0x8] sm:$0xff]
    %v508 = vld [vmem:[#allocation5 + $0x10] sm:$0xff]
    %v509 = vld [vmem:[#allocation5 + $0x18] sm:$0xff]
    %v510 = vld [vmem:[%s5] sm:$0x1]
    %v512 = vlaneseq
    %v513 = vshrl.u32 %v512, 7
    %v514 = vsub.s32 0, %v513
    %v515 = vrot.slane %v510, %v514
    %v518 = vsel %vm146, %v489, 0
    %520 = vmatprep.subr.mxu0 0.0
    %521 = vmatpush1.msra.mxu0 %v506
    %522 = vmatprep.subr.mxu0 0.0
    %523 = vmatpush1.msra.mxu0 %v507
    %524 = vmatprep.subr.mxu0 0.0
    %525 = vmatpush1.msra.mxu0 %v508
    %526 = vmatprep.subr.mxu0 0.0
    %527 = vmatpush1.msra.mxu0 %v509
    %528 = vmatprep.subr.mxu0 0.0
    %529 = vmatpush1.msra.mxu0 0.0
    %530 = vmatprep.subr.mxu0 0.0
    %531 = vmatpush1.msra.mxu0 0.0
    %532 = vmatprep.subr.mxu0 0.0
    %533 = vmatpush1.msra.mxu0 0.0
    %534 = vmatprep.subr.mxu0 0.0
    %535 = vmatpush1.msra.mxu0 0.0
    %536 = vmatprep.subr.mxu0 0.0
    %537 = vmatpush1.msra.mxu0 0.0
    %538 = vmatprep.subr.mxu0 0.0
    %539 = vmatpush1.msra.mxu0 0.0
    %540 = vmatprep.subr.mxu0 0.0
    %541 = vmatpush1.msra.mxu0 0.0
    %542 = vmatprep.subr.mxu0 0.0
    %543 = vmatpush1.msra.mxu0 0.0
    %544 = vmatprep.subr.mxu0 0.0
    %545 = vmatpush1.msra.mxu0 0.0
    %546 = vmatprep.subr.mxu0 0.0
    %547 = vmatpush1.msra.mxu0 0.0
    %548 = vmatprep.subr.mxu0 0.0
    %549 = vmatpush1.msra.mxu0 0.0
    %550 = vmatprep.subr.mxu0 0.0
    %551 = vmatpush1.msra.mxu0 0.0
    %552 = vmatprep.subr.mxu0 0.0
    %553 = vmatpush1.msra.mxu0 0.0
    %554 = vmatprep.subr.mxu0 0.0
    %555 = vmatpush1.msra.mxu0 0.0
    %556 = vmatprep.subr.mxu0 0.0
    %557 = vmatpush1.msra.mxu0 0.0
    %558 = vmatprep.subr.mxu0 0.0
    %559 = vmatpush1.msra.mxu0 0.0
    %560 = vmatprep.subr.mxu0 0.0
    %561 = vmatpush1.msra.mxu0 0.0
    %562 = vmatprep.subr.mxu0 0.0
    %563 = vmatpush1.msra.mxu0 0.0
    %564 = vmatprep.subr.mxu0 0.0
    %565 = vmatpush1.msra.mxu0 0.0
    %566 = vmatprep.subr.mxu0 0.0
    %567 = vmatpush1.msra.mxu0 0.0
    %568 = vmatprep.subr.mxu0 0.0
    %569 = vmatpush1.msra.mxu0 0.0
    %570 = vmatprep.subr.mxu0 0.0
    %571 = vmatpush1.msra.mxu0 0.0
    %572 = vmatprep.subr.mxu0 0.0
    %573 = vmatpush1.msra.mxu0 0.0
    %574 = vmatprep.subr.mxu0 0.0
    %575 = vmatpush1.msra.mxu0 0.0
    %576 = vmatprep.subr.mxu0 0.0
    %577 = vmatpush1.msra.mxu0 0.0
    %578 = vmatprep.subr.mxu0 0.0
    %579 = vmatpush1.msra.mxu0 0.0
    %580 = vmatprep.subr.mxu0 0.0
    %581 = vmatpush1.msra.mxu0 0.0
    %582 = vmatprep.subr.mxu0 0.0
    %583 = vmatpush1.msra.mxu0 0.0
    %584 = vmatprep.mubr.f32.mxu0 0.0
    %585 = vmatmul.mubr.f32.gmra.mrb[0].mxu0 %v518
    %v586 = vpop.f32.mrb[0].mxu0
    %v587 = vadd.f32 %v515, %v586
    %v588 = vpop.f32.mrb[0].mxu0
    %589 = vdwg.mxu0
    %590 = vst [vmem:[#allocation7] sm:$0xff] %v587
    // Predicated region
    $region34: #{tpu_custom_call.1} parent=1 // pred_check
      _
    $region35: #{tpu_custom_call.1} parent=1 // pred_check_branch
      %592 = sbr.rel (0) target = $region37
    $region36: #{tpu_custom_call.1} parent=1 // pred_region
      %s594 = ssub.s32 128, 128
      %595 = vsyncadd [#allocation4], %s594
      %s597 = sshll.u32 [#allocation7], 4
      %s598 = int_to_ptr.vmem [resolvable:$true] %s597
      %600 = dma.vmem_to_hbm [thread:$0]  %s598, 128, %s6, [#allocation4]
    $region37: #{tpu_custom_call.1} parent=1 // pred_fallthru
      _
    // Predicated region
    $region38: #{tpu_custom_call.1} parent=1 // pred_check
      _
    $region39: #{tpu_custom_call.1} parent=1 // pred_check_branch
      %602 = sbr.rel (0) target = $region41
    $region40: #{tpu_custom_call.1} parent=1 // pred_region
      %s604 = ssub.s32 256, 256
      %605 = vsyncadd [#allocation9], %s604
      %s607 = sshll.u32 [#allocation8], 4
      %s608 = int_to_ptr.vmem [resolvable:$true] %s607
      %610 = dma.vmem_to_hbm [thread:$0]  %s608, 256, %s7, [#allocation9]
    $region41: #{tpu_custom_call.1} parent=1 // pred_fallthru
      _
    // Predicated region
    $region42: #{tpu_custom_call.1} parent=1 // pred_check
      _
    $region43: #{tpu_custom_call.1} parent=1 // pred_check_branch
      %612 = sbr.rel (0) target = $region45
    $region44: #{tpu_custom_call.1} parent=1 // pred_region
      %613 = dma.done [#allocation4], 128
    $region45: #{tpu_custom_call.1} parent=1 // pred_fallthru
      _
    // Predicated region
    $region46: #{tpu_custom_call.1} parent=1 // pred_check
      _
    $region47: #{tpu_custom_call.1} parent=1 // pred_check_branch
      %615 = sbr.rel (0) target = $region49
    $region48: #{tpu_custom_call.1} parent=1 // pred_region
      %616 = dma.done [#allocation9], 256
    $region49: #{tpu_custom_call.1} parent=1 // pred_fallthru
      _
    %617 = vsyncpa [#allocation3], 1
    %618 = vsyncpa [#allocation6], 1
    %619 = vsyncpa [#allocation4], 1
    %620 = vsyncpa [#allocation9], 1

</llo_original>
